<compile_context>
chip_gen: v6e
topology: v6e:2x2x1
jax: 0.10.0
libtpu: 0.0.40
codegen_flags: <defaults>
</compile_context>

<pallas_src>
import numpy as np
import jax
import jax.numpy as jnp
from jax.experimental import pallas as pl
from jax.experimental.pallas import tpu as pltpu


MAX_TILE_XYZ = 8192           # upper bound on lanes per grid step (multiple of 128)
VMEM_TILE_BUDGET = 16 << 20   # bytes for the double-buffered x / y tiles (f32)


def _round_up(n, m):
    return ((n + m - 1) // m) * m


def _choose_tile(scp, vp, xyz):
    """Largest lane tile (multiple of 128) whose double-buffered x+y blocks fit the budget."""
    bytes_per_lane = 4 * 2 * (scp + vp)           # f32, 2x for double-buffering
    tile = (VMEM_TILE_BUDGET // bytes_per_lane) // 128 * 128
    tile = max(128, min(tile, MAX_TILE_XYZ))
    return min(tile, _round_up(xyz, 128))


def shell_signal_kernel(x_ref, m_ref, y_ref):
    # x_ref: (1, SCp, TILE)   m_ref: (Vp, SCp)   y_ref: (1, Vp, TILE)
    # y[p, xyz] = sum_k M[p, k] * x[k, xyz]  — single MXU matmul per tile.
    y_ref[0] = jnp.dot(m_ref[...], x_ref[0],
                       preferred_element_type=jnp.float32).astype(y_ref.dtype)


def shell_compute_signal(x, combined_M, V):
    """x: [B, in_ch, S, C, X, Y, Z] float32, combined_M: [Vp, SCp] float32.

    Returns y: [B, in_ch, V, X, Y, Z] float32 (PyTorch output layout).
    """
    B, IC, S, C, X, Y, Z = x.shape
    Vp, SCp = combined_M.shape
    SC = S * C
    assert SCp >= SC and SCp % 8 == 0
    assert Vp >= V and Vp % 8 == 0
    XYZ = X * Y * Z

    # Lane-dense tile (multiple of 128) sized to the VMEM budget; pad spatial axis up.
    tile = _choose_tile(SCp, Vp, XYZ)
    XYZp = _round_up(XYZ, tile)
    n_tiles = XYZp // tile

    x_flat = x.reshape(B * IC, SC, XYZ)
    # Zero-pad SC up to SCp (inert rows) and XYZ up to the tile multiple.
    x_flat = jnp.pad(x_flat, ((0, 0), (0, SCp - SC), (0, XYZp - XYZ)))

    # Memory-bound cost hint: loads (SCp*XYZp) + stores (Vp*XYZp) per batch element.
    flops = 2 * SCp * Vp * XYZp * (B * IC)
    bytes_accessed = 4 * (SCp + Vp) * XYZp * (B * IC) + 4 * SCp * Vp

    y_flat = pl.pallas_call(
        shell_signal_kernel,
        out_shape=jax.ShapeDtypeStruct((B * IC, Vp, XYZp), jnp.float32),
        grid_spec=pltpu.PrefetchScalarGridSpec(
            num_scalar_prefetch=0,
            grid=(B * IC, n_tiles),
            in_specs=[
                pl.BlockSpec((1, SCp, tile), lambda i, t: (i, 0, t)),
                pl.BlockSpec((Vp, SCp), lambda i, t: (0, 0)),   # M stays resident
            ],
            out_specs=pl.BlockSpec((1, Vp, tile), lambda i, t: (i, 0, t)),
        ),
        compiler_params=pltpu.CompilerParams(
            dimension_semantics=("parallel", "parallel")),
        cost_estimate=pl.CostEstimate(
            flops=flops, transcendentals=0, bytes_accessed=bytes_accessed),
    )(x_flat, combined_M)

    # Drop V / spatial padding and restore the PyTorch output layout.
    return y_flat[:, :V, :XYZ].reshape(B, IC, V, X, Y, Z)


def build_combined_matrix(sh2s_list, shell_inverse, C):
    """Build M [Vp, SCp] (both rounded up to multiples of 8) with
    M[p, i*C + k] = SH2S_i[k, local(p)] iff shell_inverse[p] == i; padded rows/cols = 0."""
    S = len(sh2s_list)
    V = int(shell_inverse.shape[0])
    SC = S * C
    SCp = _round_up(SC, 8)
    Vp = _round_up(V, 8)
    M = np.zeros((Vp, SCp), dtype=np.float32)
    for i, sh2s in enumerate(sh2s_list):
        cols = np.nonzero(shell_inverse == i)[0]
        M[cols, i * C:(i + 1) * C] = np.asarray(sh2s)[:C].T   # sh2s: [C_full, V_i]
    return jnp.asarray(M)


def reference_forward(x_np, sh2s_list, shell_inverse):
    """Pure-numpy replica of the PyTorch forward (loop over shells + scatter)."""
    B, IC, S, C, X, Y, Z = x_np.shape
    V = shell_inverse.shape[0]
    y = np.zeros((B, IC, V, X, Y, Z), dtype=np.float32)
    for i in range(S):
        cols = np.nonzero(shell_inverse == i)[0]
        y[:, :, cols] = np.einsum('ijklmn,kp->ijplmn', x_np[:, :, i],
                                  sh2s_list[i][:C])
    return y


if __name__ == "__main__":
    # Synthetic shell sampling (deterministic): 2 shells, 12 + 20 directions.
    B, IC = 2, 2
    S, C, C_full = 2, 6, 9
    X = Y = Z = 4
    shell_inverse = np.tile(np.array([0, 1, 0, 1, 1, 0, 1, 1], dtype=np.int32), 4)
    V = int(shell_inverse.shape[0])                 # 32
    shell_sizes = [int(np.sum(shell_inverse == i)) for i in range(S)]  # [12, 20]

    key = jax.random.PRNGKey(0)
    key, kx, k0, k1 = jax.random.split(key, 4)
    sh2s_keys = [k0, k1]
    sh2s_list = [
        np.asarray(jax.random.normal(sh2s_keys[i], (C_full, shell_sizes[i]),
                                     dtype=jnp.float32))
        for i in range(S)
    ]

    x = jax.random.normal(kx, (B, IC, S, C, X, Y, Z), dtype=jnp.float32)

    combined_M = build_combined_matrix(sh2s_list, shell_inverse, C)

    y = shell_compute_signal(x, combined_M, V)
    y = jax.block_until_ready(y)

    y_ref = reference_forward(np.asarray(x), sh2s_list, shell_inverse)
    if not np.allclose(np.asarray(y), y_ref, atol=1e-4, rtol=1e-4):
        raise AssertionError("Pallas kernel does not match PyTorch-semantics reference")

    print("KERNEL_OK")
</pallas_src>

<mosaic_0001>
module attributes {stable_mosaic.version = 11 : i64} {
  func.func @shell_signal_kernel(%arg0: i32, %arg1: i32, %arg2: memref<1x16x128xf32, #tpu.memory_space<vmem>>, %arg3: memref<32x16xf32, #tpu.memory_space<vmem>>, %arg4: memref<1x32x128xf32, #tpu.memory_space<vmem>>) attributes {dimension_semantics = [#tpu.dimension_semantics<parallel>, #tpu.dimension_semantics<parallel>], iteration_bounds = array<i64: 4, 1>, scalar_prefetch = 0 : i64, scratch_operands = 0 : i64, tpu.core_type = #tpu.core_type<tc>, window_params = [{transform_indices = @transform_0, window_bounds = array<i64: 1, 16, 128>}, {pipeline_mode = #tpu.pipeline_mode<synchronous>, transform_indices = @transform_1, window_bounds = array<i64: 32, 16>}, {transform_indices = @transform_2, window_bounds = array<i64: 1, 32, 128>}]} {
    %c0 = arith.constant 0 : index
    %c0_0 = arith.constant 0 : index
    %0 = vector.load %arg3[%c0, %c0_0] : memref<32x16xf32, #tpu.memory_space<vmem>>, vector<32x16xf32>
    %c0_1 = arith.constant 0 : index
    %c0_2 = arith.constant 0 : index
    %c0_3 = arith.constant 0 : index
    %1 = vector.load %arg2[%c0_1, %c0_2, %c0_3] : memref<1x16x128xf32, #tpu.memory_space<vmem>>, vector<1x16x128xf32>
    %2 = vector.shape_cast %1 : vector<1x16x128xf32> to vector<16x128xf32>
    %cst = arith.constant dense<0.000000e+00> : vector<32x128xf32>
    %3 = tpu.matmul %0, %2, %cst {dimension_numbers = #tpu.dot_dimension_numbers<[1], [0], [0], [1], [0, 0, 1, 1], [], []>} : vector<32x16xf32>, vector<16x128xf32>, vector<32x128xf32> -> vector<32x128xf32>
    %c0_4 = arith.constant 0 : index
    %c0_5 = arith.constant 0 : index
    %c0_6 = arith.constant 0 : index
    %4 = vector.load %arg4[%c0_4, %c0_5, %c0_6] : memref<1x32x128xf32, #tpu.memory_space<vmem>>, vector<1x32x128xf32>
    %5 = vector.shape_cast %4 : vector<1x32x128xf32> to vector<32x128xf32>
    %6 = vector.shape_cast %3 : vector<32x128xf32> to vector<1x32x128xf32>
    tpu.vector_store %arg4[%c0_4, %c0_5, %c0_6], %6 {strides = array<i32>} : memref<1x32x128xf32, #tpu.memory_space<vmem>>, vector<1x32x128xf32>,
    return
  }
  func.func @transform_0(%arg0: i32, %arg1: i32) -> (i32, i32, i32) {
    %c0_i32 = arith.constant 0 : i32
    %c0_i32_0 = arith.constant 0 : i32
    return %arg0, %c0_i32, %arg1 : i32, i32, i32
  }
  func.func @transform_1(%arg0: i32, %arg1: i32) -> (i32, i32) {
    %c0_i32 = arith.constant 0 : i32
    %c0_i32_0 = arith.constant 0 : i32
    %c0_i32_1 = arith.constant 0 : i32
    return %c0_i32, %c0_i32_0 : i32, i32
  }
  func.func @transform_2(%arg0: i32, %arg1: i32) -> (i32, i32, i32) {
    %c0_i32 = arith.constant 0 : i32
    %c0_i32_0 = arith.constant 0 : i32
    return %arg0, %c0_i32, %arg1 : i32, i32, i32
  }
}

</mosaic_0001>

<llo_original>
// kernel: tpu_custom_call.1
$region0: #{tpu_custom_call.1}
  #allocation0 [shape = 'u32[]', space=smem, size = 0x4, offset = 0x4, fixed_abs, tag = 'smem constant byte address 0x4 - core index']
  #allocation1 [shape = 'u32[144,128]{1,0:T(1,128)}', space=vmem, size = 0x12000, scoped, tag = 'internal scratch']
  %s0 = inlined_call_operand.hbm [shape: f32[4,16,128], index: 0, kind: input, shape index: {}]
  %s1 = inlined_call_operand.vmem [shape: f32[32,16], index: 1, kind: input, shape index: {}]
  %s2 = inlined_call_operand.hbm [shape: f32[4,32,128], index: 2, kind: output, shape index: {}]
  %s3 = sld [smem:[#allocation0]]
  $region45: #{tpu_custom_call.1} parent=0
    _
  %s5 = ssub.s32 1, %s3
  %s6 = scalar_select 0, %s5, %s3
  $region1: #{tpu_custom_call.1} parent=0
    #allocation2 [shape = 'u8[16384]{0}', space=vmem, size = 0x4000, scoped, tag = 'input window, operand 0']
    #allocation3 [shape = 's32[2]{0}', space=sflag, size = 0x8, scoped, tag = 'scoped memory for tpu_custom_call.1']
    #allocation4 [shape = 's32[2]{0}', space=sflag, size = 0x8, scoped, tag = 'scoped memory for tpu_custom_call.1']
    #allocation5 [shape = 'u8[32768]{0}', space=vmem, size = 0x8000, scoped, tag = 'output window, operand 0']
    %7 = vsyncpa [#allocation3], 0
    %s8 = scalar_lea.sflag [#allocation3], 1
    %9 = vsyncpa %s8, 0
    %10 = vsyncpa [#allocation4], 0
    %s11 = scalar_lea.sflag [#allocation4], 1
    %12 = vsyncpa %s11, 0
    loop: start=0, step=1, limit=6
    $region2: #{tpu_custom_call.1} parent=1 // loop_pre_header
      _
    $region3: #{tpu_custom_call.1} parent=1 // loop_header
      %s14 = sphi 0, %s18
      %p15 = scmp.ge.s32.totalorder %s14, 6
      %s21 = sphi 0, %s33
      %s22 = sphi 0, %s29
      %s23 = sphi 0, %s21
      %s24 = sphi 0, %s22
      %s25 = sphi 0, %s23
      %s26 = sphi 0, %s24
      %s38 = sphi 0, %s40
      %s41 = sphi 0, %s38
      %s42 = sphi 0, %s41
      %s58 = sphi 0, %s42
      %s62 = sphi 0, %s62
      %s64 = sphi 0, %s62
      %s65 = sphi 0, %s64
      %s79 = sphi 0, %s65
      %s87 = sphi 0, %s89
      %s90 = sphi 0, %s87
      %s91 = sphi 0, %s90
      %s107 = sphi 0, %s91
    $region4: #{tpu_custom_call.1} parent=1 // loop_header_branch
      %17 = sbr.rel (%p15) target = $region8
    $region5: #{tpu_custom_call.1} parent=1 // loop_body
      %s19 = ssub.s32 %s14, 1
      %s20 = ssub.s32 %s14, 2
      %s27 = sadd.s32 1, %s22
      %p28 = scmp.ge.s32.totalorder %s27, 1
      %s29 = scalar_select %p28, 0, %s27
      %s30 = sadd.s32 1, %s21
      %s31 = scalar_select %p28, %s30, %s21
      %p32 = scmp.ge.s32.totalorder %s31, 4
      %s33 = scalar_select %p32, 0, %s31
      %s34 = ssub.s32 %s21, %s33
      %s35 = ssub.s32 %s22, %s29
      %s36 = sor.u32 %s34, %s35
      %p37 = scmp.eq.s32.totalorder %s36, 0
      %s39 = sadd.s32 %s38, 1
      %s40 = scalar_select %p37, %s38, %s39
      %p43 = pneg %p37
      %p44 = scmp.eq.s32.totalorder %s14, 3
      %p45 = por %p43, %p44
      %p46 = scmp.ne.s32.totalorder %s38, %s41
      %p47 = scmp.eq.s32.totalorder %s14, 0
      %p48 = por %p46, %p47
      %p49 = scmp.ne.s32.totalorder %s38, %s41
      %p50 = scmp.eq.s32.totalorder %s19, 3
      %p51 = por %p49, %p50
      %p52 = scmp.ne.s32.totalorder %s41, %s42
      %p53 = scmp.eq.s32.totalorder %s19, 0
      %p54 = por %p52, %p53
      %p55 = scmp.ne.s32.totalorder %s41, %s42
      %p56 = scmp.eq.s32.totalorder %s20, 3
      %p57 = por %p55, %p56
      %p59 = scmp.ne.s32.totalorder %s42, %s58
      %p60 = scmp.eq.s32.totalorder %s20, 0
      %p61 = por %p59, %p60
      %s63 = sadd.s32 %s62, 1
      %p66 = scmp.eq.s32.totalorder %s14, 3
      %p67 = scmp.ne.s32.totalorder %s62, %s64
      %p68 = scmp.eq.s32.totalorder %s14, 0
      %p69 = por %p67, %p68
      %p70 = scmp.ne.s32.totalorder %s62, %s64
      %p71 = scmp.eq.s32.totalorder %s19, 3
      %p72 = por %p70, %p71
      %p73 = scmp.ne.s32.totalorder %s64, %s65
      %p74 = scmp.eq.s32.totalorder %s19, 0
      %p75 = por %p73, %p74
      %p76 = scmp.ne.s32.totalorder %s64, %s65
      %p77 = scmp.eq.s32.totalorder %s20, 3
      %p78 = por %p76, %p77
      %p80 = scmp.ne.s32.totalorder %s65, %s79
      %p81 = scmp.eq.s32.totalorder %s20, 0
      %p82 = por %p80, %p81
      %s83 = ssub.s32 %s21, %s33
      %s84 = ssub.s32 %s22, %s29
      %s85 = sor.u32 %s83, %s84
      %p86 = scmp.eq.s32.totalorder %s85, 0
      %s88 = sadd.s32 %s87, 1
      %s89 = scalar_select %p86, %s87, %s88
      %p92 = pneg %p86
      %p93 = scmp.eq.s32.totalorder %s14, 3
      %p94 = por %p92, %p93
      %p95 = scmp.ne.s32.totalorder %s87, %s90
      %p96 = scmp.eq.s32.totalorder %s14, 0
      %p97 = por %p95, %p96
      %p98 = scmp.ne.s32.totalorder %s87, %s90
      %p99 = scmp.eq.s32.totalorder %s19, 3
      %p100 = por %p98, %p99
      %p101 = scmp.ne.s32.totalorder %s90, %s91
      %p102 = scmp.eq.s32.totalorder %s19, 0
      %p103 = por %p101, %p102
      %p104 = scmp.ne.s32.totalorder %s90, %s91
      %p105 = scmp.eq.s32.totalorder %s20, 3
      %p106 = por %p104, %p105
      %p108 = scmp.ne.s32.totalorder %s91, %s107
      %p109 = scmp.eq.s32.totalorder %s20, 0
      %p110 = por %p108, %p109
      %p111 = scmp.le.s32.totalorder 1, %s14
      %p112 = scmp.lt.s32.totalorder %s14, 5
      %p113 = pnand %p111, %p112
      %p114 = pneg %p113
      // Predicated region
      $region9: #{tpu_custom_call.1} parent=5 // pred_check
        _
      $region10: #{tpu_custom_call.1} parent=5 // pred_check_branch
        %116 = sbr.rel (%p113) target = $region12
      $region11: #{tpu_custom_call.1} parent=5 // pred_region
        %s117 = ssub.s32 %s14, 1
        // Predicated region
        $region13: #{tpu_custom_call.1} parent=11 // pred_check
          %p118 = pneg %p75
        $region14: #{tpu_custom_call.1} parent=11 // pred_check_branch
          %120 = sbr.rel (%p118) target = $region16
        $region15: #{tpu_custom_call.1} parent=11 // pred_region
          _
        $region16: #{tpu_custom_call.1} parent=11 // pred_fallthru
          _
      $region12: #{tpu_custom_call.1} parent=5 // pred_fallthru
        _
      %p121 = scmp.lt.s32.totalorder %s14, 4
      // Predicated region
      $region17: #{tpu_custom_call.1} parent=5 // pred_check
        %p122 = pneg %p121
      $region18: #{tpu_custom_call.1} parent=5 // pred_check_branch
        %124 = sbr.rel (%p122) target = $region20
      $region19: #{tpu_custom_call.1} parent=5 // pred_region
        // Predicated region
        $region21: #{tpu_custom_call.1} parent=19 // pred_check
          %p125 = pneg %p48
        $region22: #{tpu_custom_call.1} parent=19 // pred_check_branch
          %127 = sbr.rel (%p125) target = $region24
        $region23: #{tpu_custom_call.1} parent=19 // pred_region
          %s128 = sand.u32 %s38, 1
          %s129 = scalar_lea.sflag [#allocation3], %s128
          %s130 = sand.u32 %s38, 1
          %s131 = smul.addr %s130, 16
          %s132 = scalar_lea.vmem [#allocation2], %s131
          %s134 = ssub.s32 256, 256
          %135 = vsyncadd %s129, %s134
          %s136 = smul.addr %s21, 2
          %s137 = sadd.s32 %s22, %s136
          %s138 = smul.addr %s137, 128
          %s139 = scalar_lea.hbm %s0, %s138
          %s140 = sshll.u32 %s132, 4
          %s141 = int_to_ptr.vmem [resolvable:$true] %s140
          %146 = dma.hbm_to_vmem [thread:$0]  %s139, 256, %s141, %s129, 128, 128, 8
        $region24: #{tpu_custom_call.1} parent=19 // pred_fallthru
          _
      $region20: #{tpu_custom_call.1} parent=5 // pred_fallthru
        _
      %p147 = scmp.le.s32.totalorder 1, %s14
      %p148 = scmp.lt.s32.totalorder %s14, 5
      %p149 = pnand %p147, %p148
      %p150 = pneg %p149
      // Predicated region
      $region25: #{tpu_custom_call.1} parent=5 // pred_check
        _
      $region26: #{tpu_custom_call.1} parent=5 // pred_check_branch
        %152 = sbr.rel (%p149) target = $region28
      $region27: #{tpu_custom_call.1} parent=5 // pred_region
        %s153 = ssub.s32 %s14, 1
        %s154 = sand.u32 %s41, 1
        %s155 = scalar_lea.sflag [#allocation3], %s154
        %s156 = sand.u32 %s41, 1
        %s157 = smul.addr %s156, 16
        %s158 = scalar_lea.vmem [#allocation2], %s157
        // Predicated region
        $region29: #{tpu_custom_call.1} parent=27 // pred_check
          %p159 = pneg %p54
        $region30: #{tpu_custom_call.1} parent=27 // pred_check_branch
          %161 = sbr.rel (%p159) target = $region32
        $region31: #{tpu_custom_call.1} parent=27 // pred_region
          %162 = dma.done %s155, 256
        $region32: #{tpu_custom_call.1} parent=27 // pred_fallthru
          _
        %s163 = sand.u32 %s41, 1
        %s164 = scalar_lea.sflag [#allocation3], %s163
        %s165 = sand.u32 %s41, 1
        %s166 = smul.addr %s165, 16
        %s167 = scalar_lea.vmem [#allocation2], %s166
        %p168 = pneg %p54
        %p169 = pneg %p51
        %p170 = pneg %p75
        %p171 = pneg %p72
        %p172 = pneg %p103
        %p173 = pneg %p100
        %s174 = sand.u32 %s90, 1
        %s175 = scalar_lea.sflag [#allocation4], %s174
        %s176 = sand.u32 %s90, 1
        %s177 = smul.addr %s176, 32
        %s178 = scalar_lea.vmem [#allocation5], %s177
        %v179 = vld [vmem:[%s1] sm:$0xff]
        %v180 = vld [vmem:[%s1 + $0x8] sm:$0xff]
        %v181 = vld [vmem:[%s1 + $0x10] sm:$0xff]
        %v182 = vld [vmem:[%s1 + $0x18] sm:$0xff]
        %v183 = vld [vmem:[%s158] sm:$0xff]
        %v184 = vld [vmem:[%s158 + $0x8] sm:$0xff]
        %vm185 = vcmask 130048
        %v187 = vsel %vm185, %v179, 0
        %v190 = vsel %vm185, %v180, 0
        %v193 = vsel %vm185, %v181, 0
        %v196 = vsel %vm185, %v182, 0
        %198 = vmatprep.subr.mxu0 0.0
        %199 = vmatpush1.msra.mxu0 0.0
        %200 = vmatprep.subr.mxu0 0.0
        %201 = vmatpush1.msra.mxu0 0.0
        %202 = vmatprep.subr.mxu0 0.0
        %203 = vmatpush1.msra.mxu0 0.0
        %204 = vmatprep.subr.mxu0 0.0
        %205 = vmatpush1.msra.mxu0 0.0
        %206 = vmatprep.subr.mxu0 0.0
        %207 = vmatpush1.msra.mxu0 0.0
        %208 = vmatprep.subr.mxu0 0.0
        %209 = vmatpush1.msra.mxu0 0.0
        %210 = vmatprep.subr.mxu0 0.0
        %211 = vmatpush1.msra.mxu0 0.0
        %212 = vmatprep.subr.mxu0 0.0
        %213 = vmatpush1.msra.mxu0 0.0
        %214 = vmatprep.subr.mxu0 0.0
        %215 = vmatpush1.msra.mxu0 0.0
        %216 = vmatprep.subr.mxu0 0.0
        %217 = vmatpush1.msra.mxu0 0.0
        %218 = vmatprep.subr.mxu0 0.0
        %219 = vmatpush1.msra.mxu0 0.0
        %220 = vmatprep.subr.mxu0 0.0
        %221 = vmatpush1.msra.mxu0 0.0
        %222 = vmatprep.subr.mxu0 0.0
        %223 = vmatpush1.msra.mxu0 0.0
        %224 = vmatprep.subr.mxu0 0.0
        %225 = vmatpush1.msra.mxu0 0.0
        %226 = vmatprep.subr.mxu0 0.0
        %227 = vmatpush1.msra.mxu0 %v184
        %228 = vmatprep.subr.mxu0 0.0
        %229 = vmatpush1.msra.mxu0 %v183
        %230 = vmatprep.subr.mxu0 0.0
        %231 = vmatpush2.msra.mxu0 0.0
        %232 = vmatprep.subr.mxu0 0.0
        %233 = vmatpush2.msra.mxu0 0.0
        %234 = vmatprep.subr.mxu0 0.0
        %235 = vmatpush2.msra.mxu0 0.0
        %236 = vmatprep.subr.mxu0 0.0
        %237 = vmatpush2.msra.mxu0 0.0
        %238 = vmatprep.subr.mxu0 0.0
        %239 = vmatpush2.msra.mxu0 0.0
        %240 = vmatprep.subr.mxu0 0.0
        %241 = vmatpush2.msra.mxu0 0.0
        %242 = vmatprep.subr.mxu0 0.0
        %243 = vmatpush2.msra.mxu0 0.0
        %244 = vmatprep.subr.mxu0 0.0
        %245 = vmatpush2.msra.mxu0 0.0
        %246 = vmatprep.subr.mxu0 0.0
        %247 = vmatpush2.msra.mxu0 0.0
        %248 = vmatprep.subr.mxu0 0.0
        %249 = vmatpush2.msra.mxu0 0.0
        %250 = vmatprep.subr.mxu0 0.0
        %251 = vmatpush2.msra.mxu0 0.0
        %252 = vmatprep.subr.mxu0 0.0
        %253 = vmatpush2.msra.mxu0 0.0
        %254 = vmatprep.subr.mxu0 0.0
        %255 = vmatpush2.msra.mxu0 0.0
        %256 = vmatprep.subr.mxu0 0.0
        %257 = vmatpush2.msra.mxu0 0.0
        %258 = vmatprep.subr.mxu0 0.0
        %259 = vmatpush2.msra.mxu0 0.0
        %260 = vmatprep.subr.mxu0 0.0
        %261 = vmatpush2.msra.mxu0 0.0
        %262 = vmatprep.mubr.f32.mxu0 0.0
        %263 = vmatmul.mubr.f32.gmra.mxu0 %v187
        %v264 = vpop.f32.mrf.mxu0
        %v265 = vadd.f32 0.0, %v264
        %v266 = vpop.f32.mrf.mxu0
        %267 = vmatprep.mubr.f32.mxu0 0.0
        %268 = vmatmul.mubr.f32.gmra.mxu0 %v190
        %v269 = vpop.f32.mrf.mxu0
        %v270 = vadd.f32 0.0, %v269
        %v271 = vpop.f32.mrf.mxu0
        %272 = vmatprep.mubr.f32.mxu0 0.0
        %273 = vmatmul.mubr.f32.gmra.mxu0 %v193
        %v274 = vpop.f32.mrf.mxu0
        %v275 = vadd.f32 0.0, %v274
        %v276 = vpop.f32.mrf.mxu0
        %277 = vmatprep.mubr.f32.mxu0 0.0
        %278 = vmatmul.mubr.f32.gmra.mxu0 %v196
        %v279 = vpop.f32.mrf.mxu0
        %v280 = vadd.f32 0.0, %v279
        %v281 = vpop.f32.mrf.mxu0
        %282 = vdwg.mxu0
        %283 = vst [vmem:[%s178] sm:$0xff] %v265
        %284 = vst [vmem:[%s178 + $0x8] sm:$0xff] %v270
        %285 = vst [vmem:[%s178 + $0x10] sm:$0xff] %v275
        %286 = vst [vmem:[%s178 + $0x18] sm:$0xff] %v280
        %s287 = sand.u32 %s90, 1
        %s288 = scalar_lea.sflag [#allocation4], %s287
        %s289 = sand.u32 %s90, 1
        %s290 = smul.addr %s289, 32
        %s291 = scalar_lea.vmem [#allocation5], %s290
        // Predicated region
        $region33: #{tpu_custom_call.1} parent=27 // pred_check
          %p292 = pneg %p100
        $region34: #{tpu_custom_call.1} parent=27 // pred_check_branch
          %294 = sbr.rel (%p292) target = $region36
        $region35: #{tpu_custom_call.1} parent=27 // pred_region
          %s296 = ssub.s32 512, 512
          %297 = vsyncadd %s288, %s296
          %s298 = smul.addr %s23, 4
          %s299 = sadd.s32 %s24, %s298
          %s300 = smul.addr %s299, 128
          %s301 = scalar_lea.hbm %s2, %s300
          %s302 = sshll.u32 %s291, 4
          %s303 = int_to_ptr.vmem [resolvable:$true] %s302
          %308 = dma.vmem_to_hbm [thread:$0]  %s303, 512, %s301, %s288, 128, 128, 8
        $region36: #{tpu_custom_call.1} parent=27 // pred_fallthru
          _
      $region28: #{tpu_custom_call.1} parent=5 // pred_fallthru
        _
      %p309 = scmp.le.s32.totalorder 2, %s14
      // Predicated region
      $region37: #{tpu_custom_call.1} parent=5 // pred_check
        %p310 = pneg %p309
      $region38: #{tpu_custom_call.1} parent=5 // pred_check_branch
        %312 = sbr.rel (%p310) target = $region40
      $region39: #{tpu_custom_call.1} parent=5 // pred_region
        %s313 = ssub.s32 %s14, 2
        // Predicated region
        $region41: #{tpu_custom_call.1} parent=39 // pred_check
          %p314 = pneg %p106
        $region42: #{tpu_custom_call.1} parent=39 // pred_check_branch
          %316 = sbr.rel (%p314) target = $region44
        $region43: #{tpu_custom_call.1} parent=39 // pred_region
          %s317 = sand.u32 %s91, 1
          %s318 = scalar_lea.sflag [#allocation4], %s317
          %s319 = sand.u32 %s91, 1
          %s320 = smul.addr %s319, 32
          %s321 = scalar_lea.vmem [#allocation5], %s320
          %322 = dma.done %s318, 512
        $region44: #{tpu_custom_call.1} parent=39 // pred_fallthru
          _
      $region40: #{tpu_custom_call.1} parent=5 // pred_fallthru
        _
    $region6: #{tpu_custom_call.1} parent=1 // loop_footer
      %s18 = sadd.s32 1, %s14
    $region7: #{tpu_custom_call.1} parent=1 // loop_footer_branch
      %13 = sbr.rel target = $region3
    $region8: #{tpu_custom_call.1} parent=1 // loop_exit
      _
    %323 = vsyncpa [#allocation3], 1
    %s324 = scalar_lea.sflag [#allocation3], 1
    %325 = vsyncpa %s324, 1
    %326 = vsyncpa [#allocation4], 1
    %s327 = scalar_lea.sflag [#allocation4], 1
    %328 = vsyncpa %s327, 1

</llo_original>
